<compile_context>
chip_gen: v7x
topology: tpu7x:2x2x1
jax: 0.10.0
libtpu: 0.0.40
codegen_flags: <defaults>
</compile_context>

<pallas_src>
import jax
import jax.numpy as jnp
from jax.experimental import pallas as pl
from jax.experimental.pallas import tpu as pltpu

_EPS2 = 1e-24  # (1e-12)**2 -- F.normalize eps, applied to the squared norm.


def _rmsnorm_kernel_packed(x_ref, g_ref, bd_ref, o_ref):
    # x_ref: (R, PD) tile (PD = pack*dim = 128), one (batch, head) row-block.
    # g_ref: (1, PD) scale-folded, segment-replicated gamma for that head.
    # bd_ref: (PD, PD) block-diagonal ones matrix (segment membership).
    x = x_ref[...].astype(jnp.float32)
    g = g_ref[...].astype(jnp.float32)
    sq = x * x
    # MXU segmented reduce: lane j of seg_sum holds sum of sq over j's segment.
    seg_sum = jnp.dot(sq, bd_ref[...], preferred_element_type=jnp.float32)
    inv = jax.lax.rsqrt(jnp.maximum(seg_sum, _EPS2))
    o_ref[...] = (x * inv * g).astype(o_ref.dtype)


def _rmsnorm_kernel_rowwise(x_ref, g_ref, o_ref):
    # x_ref: (R, D) tile with D already lane-dense (>=128) or awkward shape.
    x = x_ref[...].astype(jnp.float32)
    g = g_ref[...].astype(jnp.float32)
    ssum = jnp.sum(x * x, axis=-1, keepdims=True)
    inv = jax.lax.rsqrt(jnp.maximum(ssum, _EPS2))
    o_ref[...] = (x * inv * g).astype(o_ref.dtype)


def rmsnorm(x: jax.Array, gamma: jax.Array) -> jax.Array:
    """x: (B, H, S, D), gamma: (H, 1, D) -> (B, H, S, D)."""
    B, H, S, D = x.shape
    assert gamma.shape == (H, 1, D)
    scale = float(D) ** (-0.5)

    # Lane packing factor: put `pack` consecutive seq positions of one head
    # side by side so the last (lane) axis is 128 wide. Pure reshape.
    if D < 128 and 128 % D == 0 and S % (128 // D) == 0:
        pack = 128 // D
    else:
        pack = 1
    Sp = S // pack
    PD = pack * D

    x_p = x.reshape(B, H, Sp, PD)
    # Fold the static dim**-0.5 into gamma and replicate it per packed segment.
    g_p = jnp.tile(gamma.reshape(H, D).astype(jnp.float32) * scale, (1, pack))
    g_p = g_p.reshape(H, 1, PD)

    # Row tile: ~1 MiB of fp32 per input block (multiple-of-8 rows), which
    # keeps double-buffered in/out buffers well inside default scoped VMEM on
    # v5e/v6e/v7x while giving big DMAs.
    bytes_per_row = PD * 4
    r_target = max(8, (1 << 20) // bytes_per_row)
    if Sp <= r_target:
        block_rows = Sp
    else:
        block_rows = (r_target // 8) * 8
    grid_rows = pl.cdiv(Sp, block_rows)

    x_spec = pl.BlockSpec((None, None, block_rows, PD), lambda b, h, r: (b, h, r, 0))
    g_spec = pl.BlockSpec((None, 1, PD), lambda b, h, r: (h, 0, 0))
    out_spec = pl.BlockSpec((None, None, block_rows, PD), lambda b, h, r: (b, h, r, 0))

    if pack > 1:
        # Block-diagonal segment-membership matrix (PD, PD); constant index
        # map -> DMA'd once, then resident.
        lane = jnp.arange(PD)
        bd = (lane[:, None] // D == lane[None, :] // D).astype(jnp.float32)
        kernel = _rmsnorm_kernel_packed
        in_specs = [x_spec, g_spec, pl.BlockSpec((PD, PD), lambda b, h, r: (0, 0))]
        args = (x_p, g_p, bd)
    else:
        kernel = _rmsnorm_kernel_rowwise
        in_specs = [x_spec, g_spec]
        args = (x_p, g_p)

    out = pl.pallas_call(
        kernel,
        out_shape=jax.ShapeDtypeStruct((B, H, Sp, PD), x.dtype),
        grid_spec=pltpu.PrefetchScalarGridSpec(
            num_scalar_prefetch=0,
            grid=(B, H, grid_rows),
            in_specs=in_specs,
            out_specs=out_spec,
        ),
        compiler_params=pltpu.CompilerParams(
            dimension_semantics=("parallel", "parallel", "parallel"),
        ),
    )(*args)
    return out.reshape(B, H, S, D)


def _rmsnorm_ref(x, gamma):
    scale = x.shape[-1] ** (-0.5)
    norm = jnp.maximum(
        jnp.sqrt(jnp.sum(x.astype(jnp.float32) ** 2, axis=-1, keepdims=True)), 1e-12
    )
    return (x / norm) * scale * gamma[None, :, :, :]


if __name__ == "__main__":
    B, H, S, D = 2, 4, 8, 32

    key = jax.random.PRNGKey(0)
    x = jax.random.normal(key, (B, H, S, D), dtype=jnp.float32)
    # nn.Parameter(torch.ones(heads, 1, dim)) -> deterministic ones init.
    gamma = jnp.ones((H, 1, D), dtype=jnp.float32)

    out = rmsnorm(x, gamma)
    jax.block_until_ready(out)

    ref = _rmsnorm_ref(x, gamma)
    assert out.shape == (B, H, S, D)
    assert jnp.allclose(out, ref, atol=1e-5, rtol=1e-5)

    print("KERNEL_OK")
</pallas_src>

<mosaic_0001>
module attributes {stable_mosaic.version = 11 : i64} {
  func.func @_rmsnorm_kernel_packed(%arg0: i32, %arg1: i32, %arg2: i32, %arg3: memref<1x1x2x128xf32, #tpu.memory_space<vmem>>, %arg4: memref<1x1x128xf32, #tpu.memory_space<vmem>>, %arg5: memref<128x128xf32, #tpu.memory_space<vmem>>, %arg6: memref<1x1x2x128xf32, #tpu.memory_space<vmem>>) attributes {dimension_semantics = [#tpu.dimension_semantics<parallel>, #tpu.dimension_semantics<parallel>, #tpu.dimension_semantics<parallel>], iteration_bounds = array<i64: 2, 4, 1>, scalar_prefetch = 0 : i64, scratch_operands = 0 : i64, tpu.core_type = #tpu.core_type<tc>, window_params = [{transform_indices = @transform_0, window_bounds = array<i64: 1, 1, 2, 128>}, {transform_indices = @transform_1, window_bounds = array<i64: 1, 1, 128>}, {pipeline_mode = #tpu.pipeline_mode<synchronous>, transform_indices = @transform_2, window_bounds = array<i64: 128, 128>}, {transform_indices = @transform_3, window_bounds = array<i64: 1, 1, 2, 128>}]} {
    %c0 = arith.constant 0 : index
    %c0_0 = arith.constant 0 : index
    %c0_1 = arith.constant 0 : index
    %c0_2 = arith.constant 0 : index
    %0 = vector.load %arg3[%c0, %c0_0, %c0_1, %c0_2] : memref<1x1x2x128xf32, #tpu.memory_space<vmem>>, vector<1x1x2x128xf32>
    %1 = vector.shape_cast %0 : vector<1x1x2x128xf32> to vector<2x128xf32>
    %c0_3 = arith.constant 0 : index
    %c0_4 = arith.constant 0 : index
    %c0_5 = arith.constant 0 : index
    %2 = vector.load %arg4[%c0_3, %c0_4, %c0_5] : memref<1x1x128xf32, #tpu.memory_space<vmem>>, vector<1x1x128xf32>
    %3 = vector.shape_cast %2 : vector<1x1x128xf32> to vector<1x128xf32>
    %4 = arith.mulf %1, %1 : vector<2x128xf32>
    %c0_6 = arith.constant 0 : index
    %c0_7 = arith.constant 0 : index
    %5 = vector.load %arg5[%c0_6, %c0_7] : memref<128x128xf32, #tpu.memory_space<vmem>>, vector<128x128xf32>
    %cst = arith.constant dense<0.000000e+00> : vector<2x128xf32>
    %6 = tpu.matmul %4, %5, %cst {dimension_numbers = #tpu.dot_dimension_numbers<[1], [0], [0], [1], [0, 0, 1, 1], [], []>} : vector<2x128xf32>, vector<128x128xf32>, vector<2x128xf32> -> vector<2x128xf32>
    %cst_8 = arith.constant 1.000000e-24 : f32
    %7 = vector.broadcast %cst_8 : f32 to vector<2x128xf32>
    %8 = arith.maximumf %6, %7 : vector<2x128xf32>
    %9 = math.rsqrt %8 : vector<2x128xf32>
    %10 = arith.mulf %1, %9 : vector<2x128xf32>
    %11 = vector.broadcast %3 : vector<1x128xf32> to vector<2x128xf32>
    %12 = arith.mulf %10, %11 : vector<2x128xf32>
    %c0_9 = arith.constant 0 : index
    %c0_10 = arith.constant 0 : index
    %c0_11 = arith.constant 0 : index
    %c0_12 = arith.constant 0 : index
    %13 = vector.load %arg6[%c0_9, %c0_10, %c0_11, %c0_12] : memref<1x1x2x128xf32, #tpu.memory_space<vmem>>, vector<1x1x2x128xf32>
    %14 = vector.shape_cast %13 : vector<1x1x2x128xf32> to vector<2x128xf32>
    %15 = vector.shape_cast %12 : vector<2x128xf32> to vector<1x1x2x128xf32>
    tpu.vector_store %arg6[%c0_9, %c0_10, %c0_11, %c0_12], %15 {strides = array<i32>} : memref<1x1x2x128xf32, #tpu.memory_space<vmem>>, vector<1x1x2x128xf32>,
    return
  }
  func.func @transform_0(%arg0: i32, %arg1: i32, %arg2: i32) -> (i32, i32, i32, i32) {
    %c0_i32 = arith.constant 0 : i32
    %c0_i32_0 = arith.constant 0 : i32
    return %arg0, %arg1, %arg2, %c0_i32 : i32, i32, i32, i32
  }
  func.func @transform_1(%arg0: i32, %arg1: i32, %arg2: i32) -> (i32, i32, i32) {
    %c0_i32 = arith.constant 0 : i32
    %c0_i32_0 = arith.constant 0 : i32
    %c0_i32_1 = arith.constant 0 : i32
    return %arg1, %c0_i32, %c0_i32_0 : i32, i32, i32
  }
  func.func @transform_2(%arg0: i32, %arg1: i32, %arg2: i32) -> (i32, i32) {
    %c0_i32 = arith.constant 0 : i32
    %c0_i32_0 = arith.constant 0 : i32
    %c0_i32_1 = arith.constant 0 : i32
    return %c0_i32, %c0_i32_0 : i32, i32
  }
  func.func @transform_3(%arg0: i32, %arg1: i32, %arg2: i32) -> (i32, i32, i32, i32) {
    %c0_i32 = arith.constant 0 : i32
    %c0_i32_0 = arith.constant 0 : i32
    return %arg0, %arg1, %arg2, %c0_i32 : i32, i32, i32, i32
  }
}

</mosaic_0001>

<llo_original>
// kernel: tpu_custom_call.1
$region0: #{tpu_custom_call.1}
  #allocation0 [shape = 'u32[]', space=smem, size = 0x4, offset = 0x4, fixed_abs, tag = 'smem constant byte address 0x4 - core index']
  #allocation1 [shape = 'u32[144,128]{1,0:T(1,128)}', space=vmem, size = 0x12000, scoped, tag = 'internal scratch']
  %s0 = inlined_call_operand.hbm [shape: f32[2,4,2,128], index: 0, kind: input, shape index: {}]
  %s1 = inlined_call_operand.hbm [shape: f32[4,1,128], index: 1, kind: input, shape index: {}]
  %s2 = inlined_call_operand.hbm [shape: f32[128,128], index: 2, kind: input, shape index: {}]
  %s3 = inlined_call_operand.hbm [shape: f32[2,4,2,128], index: 3, kind: output, shape index: {}]
  %s4 = sld [smem:[#allocation0]]
  $region57: #{tpu_custom_call.1} parent=0
    _
  %s6 = ssub.s32 1, %s4
  %s7 = scalar_select 0, %s6, %s4
  $region1: #{tpu_custom_call.1} parent=0
    #allocation2 [shape = 'u8[2048]{0}', space=vmem, size = 0x800, scoped, tag = 'input window, operand 0']
    #allocation3 [shape = 's32[2]{0}', space=sflag, size = 0x8, scoped, tag = 'scoped memory for tpu_custom_call.1']
    #allocation4 [shape = 's32[2]{0}', space=sflag, size = 0x8, scoped, tag = 'scoped memory for tpu_custom_call.1']
    #allocation5 [shape = 'u8[1024]{0}', space=vmem, size = 0x400, scoped, tag = 'input window, operand 1']
    #allocation6 [shape = 's32[2]{0}', space=sflag, size = 0x8, scoped, tag = 'scoped memory for tpu_custom_call.1']
    #allocation7 [shape = 'u8[65536]{0}', space=vmem, size = 0x10000, scoped, tag = 'input window, operand 2, single buffered']
    #allocation8 [shape = 'u8[2048]{0}', space=vmem, size = 0x800, scoped, tag = 'output window, operand 0']
    %8 = vsyncpa [#allocation3], 0
    %s9 = scalar_lea.sflag [#allocation3], 1
    %10 = vsyncpa %s9, 0
    %11 = vsyncpa [#allocation6], 0
    %s12 = scalar_lea.sflag [#allocation6], 1
    %13 = vsyncpa %s12, 0
    %14 = vsyncpa [#allocation4], 0
    %s15 = scalar_lea.sflag [#allocation4], 1
    %16 = vsyncpa %s15, 0
    loop: start=0, step=1, limit=10
    $region2: #{tpu_custom_call.1} parent=1 // loop_pre_header
      _
    $region3: #{tpu_custom_call.1} parent=1 // loop_header
      %s18 = sphi 0, %s22
      %p19 = scmp.ge.s32.totalorder %s18, 10
      %s25 = sphi 0, %s44
      %s26 = sphi 0, %s40
      %s27 = sphi 0, %s36
      %s28 = sphi 0, %s25
      %s29 = sphi 0, %s26
      %s30 = sphi 0, %s27
      %s31 = sphi 0, %s28
      %s32 = sphi 0, %s29
      %s33 = sphi 0, %s30
      %s51 = sphi 0, %s53
      %s54 = sphi 0, %s51
      %s55 = sphi 0, %s54
      %s71 = sphi 0, %s55
      %s77 = sphi 0, %s79
      %s80 = sphi 0, %s77
      %s81 = sphi 0, %s80
      %s97 = sphi 0, %s81
      %s101 = sphi 0, %s101
      %s103 = sphi 0, %s101
      %s104 = sphi 0, %s103
      %s118 = sphi 0, %s104
      %s128 = sphi 0, %s130
      %s131 = sphi 0, %s128
      %s132 = sphi 0, %s131
      %s148 = sphi 0, %s132
    $region4: #{tpu_custom_call.1} parent=1 // loop_header_branch
      %21 = sbr.rel (%p19) target = $region8
    $region5: #{tpu_custom_call.1} parent=1 // loop_body
      %s23 = ssub.s32 %s18, 1
      %s24 = ssub.s32 %s18, 2
      %s34 = sadd.s32 1, %s27
      %p35 = scmp.ge.s32.totalorder %s34, 1
      %s36 = scalar_select %p35, 0, %s34
      %s37 = sadd.s32 1, %s26
      %s38 = scalar_select %p35, %s37, %s26
      %p39 = scmp.ge.s32.totalorder %s38, 4
      %s40 = scalar_select %p39, 0, %s38
      %s41 = sadd.s32 1, %s25
      %s42 = scalar_select %p39, %s41, %s25
      %p43 = scmp.ge.s32.totalorder %s42, 2
      %s44 = scalar_select %p43, 0, %s42
      %s45 = ssub.s32 %s25, %s44
      %s46 = ssub.s32 %s26, %s40
      %s47 = sor.u32 %s45, %s46
      %s48 = ssub.s32 %s27, %s36
      %s49 = sor.u32 %s47, %s48
      %p50 = scmp.eq.s32.totalorder %s49, 0
      %s52 = sadd.s32 %s51, 1
      %s53 = scalar_select %p50, %s51, %s52
      %p56 = pneg %p50
      %p57 = scmp.eq.s32.totalorder %s18, 7
      %p58 = por %p56, %p57
      %p59 = scmp.ne.s32.totalorder %s51, %s54
      %p60 = scmp.eq.s32.totalorder %s18, 0
      %p61 = por %p59, %p60
      %p62 = scmp.ne.s32.totalorder %s51, %s54
      %p63 = scmp.eq.s32.totalorder %s23, 7
      %p64 = por %p62, %p63
      %p65 = scmp.ne.s32.totalorder %s54, %s55
      %p66 = scmp.eq.s32.totalorder %s23, 0
      %p67 = por %p65, %p66
      %p68 = scmp.ne.s32.totalorder %s54, %s55
      %p69 = scmp.eq.s32.totalorder %s24, 7
      %p70 = por %p68, %p69
      %p72 = scmp.ne.s32.totalorder %s55, %s71
      %p73 = scmp.eq.s32.totalorder %s24, 0
      %p74 = por %p72, %p73
      %s75 = ssub.s32 %s26, %s40
      %p76 = scmp.eq.s32.totalorder %s75, 0
      %s78 = sadd.s32 %s77, 1
      %s79 = scalar_select %p76, %s77, %s78
      %p82 = pneg %p76
      %p83 = scmp.eq.s32.totalorder %s18, 7
      %p84 = por %p82, %p83
      %p85 = scmp.ne.s32.totalorder %s77, %s80
      %p86 = scmp.eq.s32.totalorder %s18, 0
      %p87 = por %p85, %p86
      %p88 = scmp.ne.s32.totalorder %s77, %s80
      %p89 = scmp.eq.s32.totalorder %s23, 7
      %p90 = por %p88, %p89
      %p91 = scmp.ne.s32.totalorder %s80, %s81
      %p92 = scmp.eq.s32.totalorder %s23, 0
      %p93 = por %p91, %p92
      %p94 = scmp.ne.s32.totalorder %s80, %s81
      %p95 = scmp.eq.s32.totalorder %s24, 7
      %p96 = por %p94, %p95
      %p98 = scmp.ne.s32.totalorder %s81, %s97
      %p99 = scmp.eq.s32.totalorder %s24, 0
      %p100 = por %p98, %p99
      %s102 = sadd.s32 %s101, 1
      %p105 = scmp.eq.s32.totalorder %s18, 7
      %p106 = scmp.ne.s32.totalorder %s101, %s103
      %p107 = scmp.eq.s32.totalorder %s18, 0
      %p108 = por %p106, %p107
      %p109 = scmp.ne.s32.totalorder %s101, %s103
      %p110 = scmp.eq.s32.totalorder %s23, 7
      %p111 = por %p109, %p110
      %p112 = scmp.ne.s32.totalorder %s103, %s104
      %p113 = scmp.eq.s32.totalorder %s23, 0
      %p114 = por %p112, %p113
      %p115 = scmp.ne.s32.totalorder %s103, %s104
      %p116 = scmp.eq.s32.totalorder %s24, 7
      %p117 = por %p115, %p116
      %p119 = scmp.ne.s32.totalorder %s104, %s118
      %p120 = scmp.eq.s32.totalorder %s24, 0
      %p121 = por %p119, %p120
      %s122 = ssub.s32 %s25, %s44
      %s123 = ssub.s32 %s26, %s40
      %s124 = sor.u32 %s122, %s123
      %s125 = ssub.s32 %s27, %s36
      %s126 = sor.u32 %s124, %s125
      %p127 = scmp.eq.s32.totalorder %s126, 0
      %s129 = sadd.s32 %s128, 1
      %s130 = scalar_select %p127, %s128, %s129
      %p133 = pneg %p127
      %p134 = scmp.eq.s32.totalorder %s18, 7
      %p135 = por %p133, %p134
      %p136 = scmp.ne.s32.totalorder %s128, %s131
      %p137 = scmp.eq.s32.totalorder %s18, 0
      %p138 = por %p136, %p137
      %p139 = scmp.ne.s32.totalorder %s128, %s131
      %p140 = scmp.eq.s32.totalorder %s23, 7
      %p141 = por %p139, %p140
      %p142 = scmp.ne.s32.totalorder %s131, %s132
      %p143 = scmp.eq.s32.totalorder %s23, 0
      %p144 = por %p142, %p143
      %p145 = scmp.ne.s32.totalorder %s131, %s132
      %p146 = scmp.eq.s32.totalorder %s24, 7
      %p147 = por %p145, %p146
      %p149 = scmp.ne.s32.totalorder %s132, %s148
      %p150 = scmp.eq.s32.totalorder %s24, 0
      %p151 = por %p149, %p150
      %p152 = scmp.le.s32.totalorder 1, %s18
      %p153 = scmp.lt.s32.totalorder %s18, 9
      %p154 = pnand %p152, %p153
      %p155 = pneg %p154
      // Predicated region
      $region9: #{tpu_custom_call.1} parent=5 // pred_check
        _
      $region10: #{tpu_custom_call.1} parent=5 // pred_check_branch
        %157 = sbr.rel (%p154) target = $region12
      $region11: #{tpu_custom_call.1} parent=5 // pred_region
        %s158 = ssub.s32 %s18, 1
        // Predicated region
        $region13: #{tpu_custom_call.1} parent=11 // pred_check
          %p159 = pneg %p114
        $region14: #{tpu_custom_call.1} parent=11 // pred_check_branch
          %161 = sbr.rel (%p159) target = $region16
        $region15: #{tpu_custom_call.1} parent=11 // pred_region
          %s163 = ssub.s32 2048, 2048
          %164 = vsyncadd [#allocation6], %s163
          %s165 = sshll.u32 [#allocation7], 4
          %s166 = int_to_ptr.vmem [resolvable:$true] %s165
          %171 = dma.hbm_to_vmem [thread:$0]  %s2, 2048, %s166, [#allocation6], 128, 128, 8
        $region16: #{tpu_custom_call.1} parent=11 // pred_fallthru
          _
      $region12: #{tpu_custom_call.1} parent=5 // pred_fallthru
        _
      %p172 = scmp.lt.s32.totalorder %s18, 8
      // Predicated region
      $region17: #{tpu_custom_call.1} parent=5 // pred_check
        %p173 = pneg %p172
      $region18: #{tpu_custom_call.1} parent=5 // pred_check_branch
        %175 = sbr.rel (%p173) target = $region20
      $region19: #{tpu_custom_call.1} parent=5 // pred_region
        // Predicated region
        $region21: #{tpu_custom_call.1} parent=19 // pred_check
          %p176 = pneg %p61
        $region22: #{tpu_custom_call.1} parent=19 // pred_check_branch
          %178 = sbr.rel (%p176) target = $region24
        $region23: #{tpu_custom_call.1} parent=19 // pred_region
          %s179 = sand.u32 %s51, 1
          %s180 = scalar_lea.sflag [#allocation3], %s179
          %s181 = sand.u32 %s51, 1
          %s182 = smul.addr %s181, 2
          %s183 = scalar_lea.vmem [#allocation2], %s182
          %s185 = ssub.s32 32, 32
          %186 = vsyncadd %s180, %s185
          %s187 = sadd.s32 %s27, %s26
          %s188 = smul.addr %s25, 4
          %s189 = sadd.s32 %s187, %s188
          %s190 = smul.addr %s189, 32
          %s191 = scalar_lea.hbm %s0, %s190
          %s193 = sshll.u32 %s183, 4
          %s194 = int_to_ptr.vmem [resolvable:$true] %s193
          %196 = dma.hbm_to_vmem [thread:$0]  %s191, 32, %s194, %s180
        $region24: #{tpu_custom_call.1} parent=19 // pred_fallthru
          _
        // Predicated region
        $region25: #{tpu_custom_call.1} parent=19 // pred_check
          %p197 = pneg %p87
        $region26: #{tpu_custom_call.1} parent=19 // pred_check_branch
          %199 = sbr.rel (%p197) target = $region28
        $region27: #{tpu_custom_call.1} parent=19 // pred_region
          %s200 = sand.u32 %s18, 1
          %s201 = scalar_lea.sflag [#allocation6], %s200
          %s202 = sand.u32 %s77, 1
          %s203 = scalar_lea.vmem [#allocation5], %s202
          %s205 = ssub.s32 16, 16
          %206 = vsyncadd %s201, %s205
          %s207 = smul.addr %s26, 16
          %s208 = scalar_lea.hbm %s1, %s207
          %s210 = sshll.u32 %s203, 4
          %s211 = int_to_ptr.vmem [resolvable:$true] %s210
          %213 = dma.hbm_to_vmem [thread:$0]  %s208, 16, %s211, %s201
        $region28: #{tpu_custom_call.1} parent=19 // pred_fallthru
          _
      $region20: #{tpu_custom_call.1} parent=5 // pred_fallthru
        _
      %p214 = scmp.le.s32.totalorder 1, %s18
      %p215 = scmp.lt.s32.totalorder %s18, 9
      %p216 = pnand %p214, %p215
      %p217 = pneg %p216
      // Predicated region
      $region29: #{tpu_custom_call.1} parent=5 // pred_check
        _
      $region30: #{tpu_custom_call.1} parent=5 // pred_check_branch
        %219 = sbr.rel (%p216) target = $region32
      $region31: #{tpu_custom_call.1} parent=5 // pred_region
        %s220 = ssub.s32 %s18, 1
        %s221 = sand.u32 %s54, 1
        %s222 = scalar_lea.sflag [#allocation3], %s221
        %s223 = sand.u32 %s54, 1
        %s224 = smul.addr %s223, 2
        %s225 = scalar_lea.vmem [#allocation2], %s224
        // Predicated region
        $region33: #{tpu_custom_call.1} parent=31 // pred_check
          %p226 = pneg %p67
        $region34: #{tpu_custom_call.1} parent=31 // pred_check_branch
          %228 = sbr.rel (%p226) target = $region36
        $region35: #{tpu_custom_call.1} parent=31 // pred_region
          %229 = dma.done %s222, 32
        $region36: #{tpu_custom_call.1} parent=31 // pred_fallthru
          _
        %s230 = sand.u32 %s23, 1
        %s231 = scalar_lea.sflag [#allocation6], %s230
        %s232 = sand.u32 %s80, 1
        %s233 = scalar_lea.vmem [#allocation5], %s232
        // Predicated region
        $region37: #{tpu_custom_call.1} parent=31 // pred_check
          %p234 = pneg %p93
        $region38: #{tpu_custom_call.1} parent=31 // pred_check_branch
          %236 = sbr.rel (%p234) target = $region40
        $region39: #{tpu_custom_call.1} parent=31 // pred_region
          %237 = dma.done %s231, 16
        $region40: #{tpu_custom_call.1} parent=31 // pred_fallthru
          _
        // Predicated region
        $region41: #{tpu_custom_call.1} parent=31 // pred_check
          %p238 = pneg %p114
        $region42: #{tpu_custom_call.1} parent=31 // pred_check_branch
          %240 = sbr.rel (%p238) target = $region44
        $region43: #{tpu_custom_call.1} parent=31 // pred_region
          %241 = dma.done [#allocation6], 2048
        $region44: #{tpu_custom_call.1} parent=31 // pred_fallthru
          _
        %s242 = sand.u32 %s54, 1
        %s243 = scalar_lea.sflag [#allocation3], %s242
        %s244 = sand.u32 %s54, 1
        %s245 = smul.addr %s244, 2
        %s246 = scalar_lea.vmem [#allocation2], %s245
        %p247 = pneg %p67
        %p248 = pneg %p64
        %s249 = sand.u32 %s23, 1
        %s250 = scalar_lea.sflag [#allocation6], %s249
        %s251 = sand.u32 %s80, 1
        %s252 = scalar_lea.vmem [#allocation5], %s251
        %p253 = pneg %p93
        %p254 = pneg %p90
        %p255 = pneg %p114
        %p256 = pneg %p111
        %p257 = pneg %p144
        %p258 = pneg %p141
        %s259 = sand.u32 %s131, 1
        %s260 = scalar_lea.sflag [#allocation4], %s259
        %s261 = sand.u32 %s131, 1
        %s262 = smul.addr %s261, 2
        %s263 = scalar_lea.vmem [#allocation8], %s262
        %v264 = vld [vmem:[%s225] sm:$0x3]
        %v265 = vld [vmem:[%s233] sm:$0x1]
        %v266 = vmul.f32 %v264, %v264
        %v267 = vld [vmem:[#allocation7] sm:$0xff]
        %v268 = vld [vmem:[#allocation7 + $0x8] sm:$0xff]
        %v269 = vld [vmem:[#allocation7 + $0x10] sm:$0xff]
        %v270 = vld [vmem:[#allocation7 + $0x18] sm:$0xff]
        %v271 = vld [vmem:[#allocation7 + $0x20] sm:$0xff]
        %v272 = vld [vmem:[#allocation7 + $0x28] sm:$0xff]
        %v273 = vld [vmem:[#allocation7 + $0x30] sm:$0xff]
        %v274 = vld [vmem:[#allocation7 + $0x38] sm:$0xff]
        %v275 = vld [vmem:[#allocation7 + $0x40] sm:$0xff]
        %v276 = vld [vmem:[#allocation7 + $0x48] sm:$0xff]
        %v277 = vld [vmem:[#allocation7 + $0x50] sm:$0xff]
        %v278 = vld [vmem:[#allocation7 + $0x58] sm:$0xff]
        %v279 = vld [vmem:[#allocation7 + $0x60] sm:$0xff]
        %v280 = vld [vmem:[#allocation7 + $0x68] sm:$0xff]
        %v281 = vld [vmem:[#allocation7 + $0x70] sm:$0xff]
        %v282 = vld [vmem:[#allocation7 + $0x78] sm:$0xff]
        %283 = vmatprep.subr.mxu0 0.0
        %284 = vmatpush1.msra.mxu0 %v267
        %285 = vmatprep.subr.mxu0 0.0
        %286 = vmatpush1.msra.mxu0 %v268
        %287 = vmatprep.subr.mxu0 0.0
        %288 = vmatpush1.msra.mxu0 %v269
        %289 = vmatprep.subr.mxu0 0.0
        %290 = vmatpush1.msra.mxu0 %v270
        %291 = vmatprep.subr.mxu0 0.0
        %292 = vmatpush1.msra.mxu0 %v271
        %293 = vmatprep.subr.mxu0 0.0
        %294 = vmatpush1.msra.mxu0 %v272
        %295 = vmatprep.subr.mxu0 0.0
        %296 = vmatpush1.msra.mxu0 %v273
        %297 = vmatprep.subr.mxu0 0.0
        %298 = vmatpush1.msra.mxu0 %v274
        %299 = vmatprep.subr.mxu0 0.0
        %300 = vmatpush1.msra.mxu0 %v275
        %301 = vmatprep.subr.mxu0 0.0
        %302 = vmatpush1.msra.mxu0 %v276
        %303 = vmatprep.subr.mxu0 0.0
        %304 = vmatpush1.msra.mxu0 %v277
        %305 = vmatprep.subr.mxu0 0.0
        %306 = vmatpush1.msra.mxu0 %v278
        %307 = vmatprep.subr.mxu0 0.0
        %308 = vmatpush1.msra.mxu0 %v279
        %309 = vmatprep.subr.mxu0 0.0
        %310 = vmatpush1.msra.mxu0 %v280
        %311 = vmatprep.subr.mxu0 0.0
        %312 = vmatpush1.msra.mxu0 %v281
        %313 = vmatprep.subr.mxu0 0.0
        %314 = vmatpush1.msra.mxu0 %v282
        %315 = vmatprep.subr.mxu0 0.0
        %316 = vmatpush1.msra.mxu0 0.0
        %317 = vmatprep.subr.mxu0 0.0
        %318 = vmatpush1.msra.mxu0 0.0
        %319 = vmatprep.subr.mxu0 0.0
        %320 = vmatpush1.msra.mxu0 0.0
        %321 = vmatprep.subr.mxu0 0.0
        %322 = vmatpush1.msra.mxu0 0.0
        %323 = vmatprep.subr.mxu0 0.0
        %324 = vmatpush1.msra.mxu0 0.0
        %325 = vmatprep.subr.mxu0 0.0
        %326 = vmatpush1.msra.mxu0 0.0
        %327 = vmatprep.subr.mxu0 0.0
        %328 = vmatpush1.msra.mxu0 0.0
        %329 = vmatprep.subr.mxu0 0.0
        %330 = vmatpush1.msra.mxu0 0.0
        %331 = vmatprep.subr.mxu0 0.0
        %332 = vmatpush1.msra.mxu0 0.0
        %333 = vmatprep.subr.mxu0 0.0
        %334 = vmatpush1.msra.mxu0 0.0
        %335 = vmatprep.subr.mxu0 0.0
        %336 = vmatpush1.msra.mxu0 0.0
        %337 = vmatprep.subr.mxu0 0.0
        %338 = vmatpush1.msra.mxu0 0.0
        %339 = vmatprep.subr.mxu0 0.0
        %340 = vmatpush1.msra.mxu0 0.0
        %341 = vmatprep.subr.mxu0 0.0
        %342 = vmatpush1.msra.mxu0 0.0
        %343 = vmatprep.subr.mxu0 0.0
        %344 = vmatpush1.msra.mxu0 0.0
        %345 = vmatprep.subr.mxu0 0.0
        %346 = vmatpush1.msra.mxu0 0.0
        %347 = vmatprep.mubr.f32.mxu0 0.0
        %348 = vmatmul.mubr.f32.gmra.mrb[0].mxu0 %v266
        %v349 = vpop.f32.mrb[0].mxu0
        %v350 = vadd.f32 0.0, %v349
        %v351 = vpop.f32.mrb[0].mxu0
        %352 = vdwg.mxu0
        %v353 = vmax.f32 %v350, 1e-24
        %v354 = vrsqrt.pop %v353
        %v355 = vmul.f32 %v264, %v354
        %v357 = vlaneseq
        %v358 = vshrl.u32 %v357, 7
        %v359 = vsub.s32 0, %v358
        %v360 = vrot.slane %v265, %v359
        %v362 = vmul.f32 %v355, %v360
        %363 = vst [vmem:[%s263] sm:$0x3] %v362
        %s364 = sand.u32 %s131, 1
        %s365 = scalar_lea.sflag [#allocation4], %s364
        %s366 = sand.u32 %s131, 1
        %s367 = smul.addr %s366, 2
        %s368 = scalar_lea.vmem [#allocation8], %s367
        // Predicated region
        $region45: #{tpu_custom_call.1} parent=31 // pred_check
          %p369 = pneg %p141
        $region46: #{tpu_custom_call.1} parent=31 // pred_check_branch
          %371 = sbr.rel (%p369) target = $region48
        $region47: #{tpu_custom_call.1} parent=31 // pred_region
          %s373 = ssub.s32 32, 32
          %374 = vsyncadd %s365, %s373
          %s375 = sadd.s32 %s30, %s29
          %s376 = smul.addr %s28, 4
          %s377 = sadd.s32 %s375, %s376
          %s378 = smul.addr %s377, 32
          %s379 = scalar_lea.hbm %s3, %s378
          %s381 = sshll.u32 %s368, 4
          %s382 = int_to_ptr.vmem [resolvable:$true] %s381
          %384 = dma.vmem_to_hbm [thread:$0]  %s382, 32, %s379, %s365
        $region48: #{tpu_custom_call.1} parent=31 // pred_fallthru
          _
      $region32: #{tpu_custom_call.1} parent=5 // pred_fallthru
        _
      %p385 = scmp.le.s32.totalorder 2, %s18
      // Predicated region
      $region49: #{tpu_custom_call.1} parent=5 // pred_check
        %p386 = pneg %p385
      $region50: #{tpu_custom_call.1} parent=5 // pred_check_branch
        %388 = sbr.rel (%p386) target = $region52
      $region51: #{tpu_custom_call.1} parent=5 // pred_region
        %s389 = ssub.s32 %s18, 2
        // Predicated region
        $region53: #{tpu_custom_call.1} parent=51 // pred_check
          %p390 = pneg %p147
        $region54: #{tpu_custom_call.1} parent=51 // pred_check_branch
          %392 = sbr.rel (%p390) target = $region56
        $region55: #{tpu_custom_call.1} parent=51 // pred_region
          %s393 = sand.u32 %s132, 1
          %s394 = scalar_lea.sflag [#allocation4], %s393
          %s395 = sand.u32 %s132, 1
          %s396 = smul.addr %s395, 2
          %s397 = scalar_lea.vmem [#allocation8], %s396
          %398 = dma.done %s394, 32
        $region56: #{tpu_custom_call.1} parent=51 // pred_fallthru
          _
      $region52: #{tpu_custom_call.1} parent=5 // pred_fallthru
        _
    $region6: #{tpu_custom_call.1} parent=1 // loop_footer
      %s22 = sadd.s32 1, %s18
    $region7: #{tpu_custom_call.1} parent=1 // loop_footer_branch
      %17 = sbr.rel target = $region3
    $region8: #{tpu_custom_call.1} parent=1 // loop_exit
      _
    %399 = vsyncpa [#allocation3], 1
    %s400 = scalar_lea.sflag [#allocation3], 1
    %401 = vsyncpa %s400, 1
    %402 = vsyncpa [#allocation6], 1
    %s403 = scalar_lea.sflag [#allocation6], 1
    %404 = vsyncpa %s403, 1
    %405 = vsyncpa [#allocation4], 1
    %s406 = scalar_lea.sflag [#allocation4], 1
    %407 = vsyncpa %s406, 1

</llo_original>
